<compile_context>
chip_gen: v5e
topology: v5e:2x2
jax: 0.10.0
libtpu: 0.0.40
codegen_flags: <defaults>
</compile_context>

<pallas_src>
import functools

import jax
import jax.numpy as jnp
import numpy as np
from jax.experimental import pallas as pl
from jax.experimental.pallas import tpu as pltpu

_NUM_CORE_SPLIT = 2  # leading "parallel" grid axis: feeds both v7x TensorCores.


def _group_assignment_kernel(pat_ref, x_ref, out_ref, p_ref, *,
                             inv_pairs, tile_n, steps_per_core, n_valid,
                             needs_mask):
    """One (core, N-tile) step of the disjoint loss.

    pat_ref: (G, C)        pa^T, constant block (stays resident in VMEM)
    x_ref:   (C, tile_n)   current batch tile (auto double-buffered)
    out_ref: (1, 128)      this core's partial sum (resident across the inner axis)
    p_ref:   (G, C)        VMEM scratch holding softmax(pa, dim=1)^T
    """
    core = pl.program_id(0)
    step = pl.program_id(1)

    @pl.when(step == 0)
    def _init():
        # Hoisted softmax: computed once per core, reused for every N tile.
        pat = pat_ref[...]                                    # (G, C)
        m = jnp.max(pat, axis=0, keepdims=True)               # (1, C)
        e = jnp.exp(pat - m)                                  # (G, C)
        p_ref[...] = e / jnp.sum(e, axis=0, keepdims=True)    # (G, C)
        out_ref[...] = jnp.zeros_like(out_ref)

    x = x_ref[...]                                            # (C, tile_n)
    p_t = p_ref[...]                                          # (G, C)

    # gw[g, n] = sum_c p[c, g] * x[c, n] : canonical (G,C)@(C,tile_n) MXU matmul.
    gw = jnp.dot(p_t, x, preferred_element_type=jnp.float32)  # (G, tile_n)

    # Per-column (lane-local) combined term:
    #   2 * sum_{i<j} gw[i,n]*gw[j,n] = (sum_i gw[i,n])^2 - sum_i gw[i,n]^2
    s = jnp.sum(gw, axis=0, keepdims=True)                    # (1, tile_n)
    gsq = jnp.sum(gw * gw, axis=0, keepdims=True)             # (1, tile_n)
    per_lane = s * s - gsq                                    # (1, tile_n)

    if needs_mask:
        # Zero lanes past the true batch size.  Everything above is column-local,
        # so masking here (1 x tile_n) is exact and much cheaper than masking the
        # whole x tile.  valid <= 0 also kills duplicated overrun slots that the
        # clamped index_map re-reads (and select drops any OOB garbage/NaN).
        global_tile = core * steps_per_core + step            # UNclamped index
        valid = n_valid - global_tile * tile_n
        lane = jax.lax.broadcasted_iota(jnp.int32, per_lane.shape, 1)
        per_lane = jnp.where(lane < valid, per_lane, 0.0)

    out_ref[...] += 0.5 * jnp.sum(per_lane, axis=1, keepdims=True)

    @pl.when(step == pl.num_programs(1) - 1)
    def _finalize():
        # mean over the G*(G-1)/2 (i<j) pairs: multiply by a baked-in constant.
        out_ref[...] = out_ref[...] * jnp.float32(inv_pairs)


def _round_up(n, m):
    return ((n + m - 1) // m) * m


def group_assignment_loss(x, pa, *, tile_n_cap=65536):
    """Disjoint group-assignment loss (PyTorch GroupAssignmentLoss.forward).

    x:  (num_classes, N) float32 -- the layout the PyTorch forward consumes
        (it transposes internally).
    pa: (num_classes, num_groups) float32 logits; softmax over groups is taken
        inside the kernel.

    tile_n_cap=65536 keeps each x tile (C=16 f32) at 4 MiB (8 MiB double
    buffered), amortizing per-grid-step overhead while fitting scoped VMEM on
    v5e/v6e/v7x (vmem_limit_bytes is raised explicitly below).
    """
    x = jnp.asarray(x, jnp.float32)
    pa = jnp.asarray(pa, jnp.float32)
    num_classes, n = x.shape
    assert pa.shape[0] == num_classes, (x.shape, pa.shape)
    assert n >= 1
    num_groups = pa.shape[1]
    if num_groups < 2:
        raise ValueError("GroupAssignmentLoss forward needs num_groups >= 2 "
                         "(there are no i<j pairs otherwise).")

    n_pairs = num_groups * (num_groups - 1) // 2
    inv_pairs = 1.0 / float(n_pairs)

    # Tiny-N corner case only: ensure at least one full 128-lane tile exists.
    # (Zero columns are exact no-ops for this loss.)  For all other N we do NOT
    # pad/copy x -- the tail lanes are masked in-kernel instead.
    if n < 128:
        x = jnp.pad(x, ((0, 0), (0, 128 - n)))

    tile_n_cap = max(128, (int(tile_n_cap) // 128) * 128)
    tile_n = min(tile_n_cap, _round_up(n, 128))
    n_tiles = _round_up(n, tile_n) // tile_n                       # cdiv(n, tile_n)
    steps_per_core = _round_up(n_tiles, _NUM_CORE_SPLIT) // _NUM_CORE_SPLIT
    # Mask whenever some (core, step) slot covers columns >= n (tail remainder
    # and/or duplicated overrun slots when n_tiles is odd).
    needs_mask = (_NUM_CORE_SPLIT * steps_per_core * tile_n != n)

    if _NUM_CORE_SPLIT * steps_per_core == n_tiles:
        x_index_map = lambda c, i: (0, c * steps_per_core + i)
    else:
        # Clamp overrun slots to the last valid tile so the DMA never walks off
        # the array; their contribution is zeroed by the in-kernel mask.
        x_index_map = lambda c, i: (
            0, jnp.minimum(c * steps_per_core + i, n_tiles - 1))

    pat = pa.T  # (G, C): puts the in-kernel projection in canonical MXU form.

    kernel = functools.partial(
        _group_assignment_kernel,
        inv_pairs=inv_pairs, tile_n=tile_n, steps_per_core=steps_per_core,
        n_valid=n, needs_mask=needs_mask)

    # Scoped-VMEM budget: double-buffered x tiles + gw temporary + headroom.
    x_tile_bytes = num_classes * tile_n * 4
    gw_bytes = num_groups * tile_n * 4
    vmem_limit = int(min(48 << 20,
                         max(24 << 20, 2 * x_tile_bytes + gw_bytes + (8 << 20))))

    out = pl.pallas_call(
        kernel,
        out_shape=jax.ShapeDtypeStruct((1, _NUM_CORE_SPLIT * 128), jnp.float32),
        grid_spec=pltpu.PrefetchScalarGridSpec(
            num_scalar_prefetch=0,
            grid=(_NUM_CORE_SPLIT, steps_per_core),
            in_specs=[
                # pa^T: full tiny array, constant block -> stays resident in VMEM.
                pl.BlockSpec((num_groups, num_classes), lambda c, i: (0, 0)),
                # x: tiled along N, auto double-buffered HBM->VMEM.
                pl.BlockSpec((num_classes, tile_n), x_index_map),
            ],
            # Each core owns a lane-disjoint (1,128) output block -> no write race.
            out_specs=pl.BlockSpec((1, 128), lambda c, i: (0, c)),
            scratch_shapes=[pltpu.VMEM((num_groups, num_classes), jnp.float32)],
        ),
        compiler_params=pltpu.CompilerParams(
            dimension_semantics=("parallel", "arbitrary"),
            vmem_limit_bytes=vmem_limit,
        ),
    )(pat, x)
    # Every lane of a core's block holds that core's (already scaled) partial sum.
    return jnp.sum(out[0, ::128])


def _reference(x, pa):
    # Direct transcription of the PyTorch forward.
    p = jax.nn.softmax(pa, axis=1)                                     # (C, G)
    xt = x.T                                                           # (N, C)
    G = pa.shape[1]
    gw = jnp.stack([(xt * p[:, i]).T.sum(axis=0) for i in range(G)])   # (G, N)
    pairs = [gw[i] * gw[j] for i in range(G) for j in range(G) if i < j]
    sums = jnp.stack(pairs).sum(axis=1)
    return jnp.mean(sums)


if __name__ == "__main__":
    key = jax.random.PRNGKey(0)
    kx, kp, kx2, kp2, kx3, kp3 = jax.random.split(key, 6)

    # x in the layout the PyTorch forward consumes: (num_classes, batch).
    num_classes, num_groups, batch = 16, 8, 128
    x = jax.random.normal(kx, (num_classes, batch), dtype=jnp.float32)
    # deterministic parameter init matching param(): Normal(mean=0, std=0.01)
    pa = 0.01 * jax.random.normal(kp, (num_classes, num_groups), dtype=jnp.float32)

    out = jax.block_until_ready(group_assignment_loss(x, pa))
    ref = _reference(x, pa)
    assert np.allclose(np.asarray(out), np.asarray(ref), rtol=1e-4, atol=1e-5), (out, ref)

    # Multi-step grid + in-kernel tail mask + odd-tile-count overrun slot
    # (N=300, tile_n=128 -> 3 tiles over a (2,2) grid, one clamped+masked slot).
    x2 = jax.random.normal(kx2, (16, 300), dtype=jnp.float32)
    pa2 = 0.01 * jax.random.normal(kp2, (16, 4), dtype=jnp.float32)
    out2 = jax.block_until_ready(group_assignment_loss(x2, pa2, tile_n_cap=128))
    ref2 = _reference(x2, pa2)
    assert np.allclose(np.asarray(out2), np.asarray(ref2), rtol=1e-4, atol=1e-5), (out2, ref2)

    # Exact-cover path (no mask, no clamp): N=256, tile_n=128 -> (2,1) grid.
    x3 = jax.random.normal(kx3, (16, 256), dtype=jnp.float32)
    pa3 = 0.01 * jax.random.normal(kp3, (16, 8), dtype=jnp.float32)
    out3 = jax.block_until_ready(group_assignment_loss(x3, pa3, tile_n_cap=128))
    ref3 = _reference(x3, pa3)
    assert np.allclose(np.asarray(out3), np.asarray(ref3), rtol=1e-4, atol=1e-5), (out3, ref3)

    # TODO(synk): overlap_loss / balance_loss auxiliary methods not implemented
    # (only the forward pass was requested).
    print("KERNEL_OK")
</pallas_src>

<mosaic_0001>
module attributes {stable_mosaic.version = 11 : i64} {
  func.func @_group_assignment_kernel(%arg0: i32, %arg1: i32, %arg2: memref<8x16xf32, #tpu.memory_space<vmem>>, %arg3: memref<16x128xf32, #tpu.memory_space<vmem>>, %arg4: memref<1x128xf32, #tpu.memory_space<vmem>>, %arg5: memref<8x16xf32, #tpu.memory_space<vmem>>) attributes {dimension_semantics = [#tpu.dimension_semantics<parallel>, #tpu.dimension_semantics<arbitrary>], iteration_bounds = array<i64: 2, 1>, scalar_prefetch = 0 : i64, scratch_operands = 1 : i64, tpu.core_type = #tpu.core_type<tc>, window_params = [{pipeline_mode = #tpu.pipeline_mode<synchronous>, transform_indices = @transform_0, window_bounds = array<i64: 8, 16>}, {transform_indices = @transform_1, window_bounds = array<i64: 16, 128>}, {transform_indices = @transform_2, window_bounds = array<i64: 1, 128>}]} {
    %c0_i32 = arith.constant 0 : i32
    %0 = arith.cmpi eq, %arg1, %c0_i32 : i32
    %1 = arith.extui %0 : i1 to i32
    %c0_i32_0 = arith.constant 0 : i32
    %2 = arith.cmpi ne, %1, %c0_i32_0 : i32
    scf.if %2 {
      %c0_16 = arith.constant 0 : index
      %c0_17 = arith.constant 0 : index
      %33 = vector.load %arg2[%c0_16, %c0_17] : memref<8x16xf32, #tpu.memory_space<vmem>>, vector<8x16xf32>
      %cst_18 = arith.constant dense<0xFF800000> : vector<16xf32>
      %34 = vector.multi_reduction <maximumf>, %33, %cst_18 [0] : vector<8x16xf32> to vector<16xf32>
      %35 = vector.shape_cast %34 : vector<16xf32> to vector<1x16xf32>
      %36 = vector.broadcast %35 : vector<1x16xf32> to vector<8x16xf32>
      %37 = arith.subf %33, %36 : vector<8x16xf32>
      %38 = math.exp %37 : vector<8x16xf32>
      %cst_19 = arith.constant dense<0.000000e+00> : vector<16xf32>
      %39 = vector.multi_reduction <add>, %38, %cst_19 [0] : vector<8x16xf32> to vector<16xf32>
      %40 = vector.shape_cast %39 : vector<16xf32> to vector<1x16xf32>
      %41 = vector.broadcast %40 : vector<1x16xf32> to vector<8x16xf32>
      %42 = arith.divf %38, %41 : vector<8x16xf32>
      %c0_20 = arith.constant 0 : index
      %c0_21 = arith.constant 0 : index
      %43 = vector.load %arg5[%c0_20, %c0_21] : memref<8x16xf32, #tpu.memory_space<vmem>>, vector<8x16xf32>
      tpu.vector_store %arg5[%c0_20, %c0_21], %42 {strides = array<i32>} : memref<8x16xf32, #tpu.memory_space<vmem>>, vector<8x16xf32>,
      %cst_22 = arith.constant 0.000000e+00 : f32
      %44 = vector.broadcast %cst_22 : f32 to vector<1x128xf32>
      %c0_23 = arith.constant 0 : index
      %c0_24 = arith.constant 0 : index
      %45 = vector.load %arg4[%c0_23, %c0_24] : memref<1x128xf32, #tpu.memory_space<vmem>>, vector<1x128xf32>
      tpu.vector_store %arg4[%c0_23, %c0_24], %44 {strides = array<i32>} : memref<1x128xf32, #tpu.memory_space<vmem>>, vector<1x128xf32>,
    } else {
    }
    %c0 = arith.constant 0 : index
    %c0_1 = arith.constant 0 : index
    %3 = vector.load %arg3[%c0, %c0_1] : memref<16x128xf32, #tpu.memory_space<vmem>>, vector<16x128xf32>
    %c0_2 = arith.constant 0 : index
    %c0_3 = arith.constant 0 : index
    %4 = vector.load %arg5[%c0_2, %c0_3] : memref<8x16xf32, #tpu.memory_space<vmem>>, vector<8x16xf32>
    %cst = arith.constant dense<0.000000e+00> : vector<8x128xf32>
    %5 = tpu.matmul %4, %3, %cst {dimension_numbers = #tpu.dot_dimension_numbers<[1], [0], [0], [1], [0, 0, 1, 1], [], []>} : vector<8x16xf32>, vector<16x128xf32>, vector<8x128xf32> -> vector<8x128xf32>
    %cst_4 = arith.constant dense<0.000000e+00> : vector<128xf32>
    %6 = vector.multi_reduction <add>, %5, %cst_4 [0] : vector<8x128xf32> to vector<128xf32>
    %7 = vector.shape_cast %6 : vector<128xf32> to vector<1x128xf32>
    %8 = arith.mulf %5, %5 : vector<8x128xf32>
    %cst_5 = arith.constant dense<0.000000e+00> : vector<128xf32>
    %9 = vector.multi_reduction <add>, %8, %cst_5 [0] : vector<8x128xf32> to vector<128xf32>
    %10 = vector.shape_cast %9 : vector<128xf32> to vector<1x128xf32>
    %11 = arith.mulf %7, %7 : vector<1x128xf32>
    %12 = arith.subf %11, %10 : vector<1x128xf32>
    %c1_i32 = arith.constant 1 : i32
    %13 = arith.muli %arg0, %c1_i32 : i32
    %14 = arith.addi %13, %arg1 : i32
    %c128_i32 = arith.constant 128 : i32
    %15 = arith.muli %14, %c128_i32 : i32
    %c128_i32_6 = arith.constant 128 : i32
    %16 = arith.subi %c128_i32_6, %15 : i32
    %17 = tpu.iota {dimensions = array<i32: 1>} : vector<1x128xi32>
    %18 = vector.broadcast %16 : i32 to vector<1x128xi32>
    %19 = arith.cmpi slt, %17, %18 : vector<1x128xi32>
    %cst_7 = arith.constant 0.000000e+00 : f32
    %20 = vector.broadcast %cst_7 : f32 to vector<1x128xf32>
    %21 = arith.select %19, %12, %20 : vector<1x128xi1>, vector<1x128xf32>
    %c0_8 = arith.constant 0 : index
    %c0_9 = arith.constant 0 : index
    %22 = vector.load %arg4[%c0_8, %c0_9] : memref<1x128xf32, #tpu.memory_space<vmem>>, vector<1x128xf32>
    %cst_10 = arith.constant dense<0.000000e+00> : vector<1xf32>
    %23 = vector.multi_reduction <add>, %21, %cst_10 [1] : vector<1x128xf32> to vector<1xf32>
    %24 = vector.shape_cast %23 : vector<1xf32> to vector<1x1xf32>
    %cst_11 = arith.constant 5.000000e-01 : f32
    %25 = vector.broadcast %cst_11 : f32 to vector<1x1xf32>
    %26 = arith.mulf %25, %24 : vector<1x1xf32>
    %27 = vector.broadcast %26 : vector<1x1xf32> to vector<1x128xf32>
    %28 = arith.addf %22, %27 : vector<1x128xf32>
    %c0_12 = arith.constant 0 : index
    %c0_13 = arith.constant 0 : index
    %29 = vector.load %arg4[%c0_12, %c0_13] : memref<1x128xf32, #tpu.memory_space<vmem>>, vector<1x128xf32>
    tpu.vector_store %arg4[%c0_12, %c0_13], %28 {strides = array<i32>} : memref<1x128xf32, #tpu.memory_space<vmem>>, vector<1x128xf32>,
    %c0_i32_14 = arith.constant 0 : i32
    %30 = arith.cmpi eq, %arg1, %c0_i32_14 : i32
    %31 = arith.extui %30 : i1 to i32
    %c0_i32_15 = arith.constant 0 : i32
    %32 = arith.cmpi ne, %31, %c0_i32_15 : i32
    scf.if %32 {
      %c0_16 = arith.constant 0 : index
      %c0_17 = arith.constant 0 : index
      %33 = vector.load %arg4[%c0_16, %c0_17] : memref<1x128xf32, #tpu.memory_space<vmem>>, vector<1x128xf32>
      %cst_18 = arith.constant 0.0357142873 : f32
      %34 = vector.broadcast %cst_18 : f32 to vector<1x128xf32>
      %35 = arith.mulf %33, %34 : vector<1x128xf32>
      %c0_19 = arith.constant 0 : index
      %c0_20 = arith.constant 0 : index
      %36 = vector.load %arg4[%c0_19, %c0_20] : memref<1x128xf32, #tpu.memory_space<vmem>>, vector<1x128xf32>
      tpu.vector_store %arg4[%c0_19, %c0_20], %35 {strides = array<i32>} : memref<1x128xf32, #tpu.memory_space<vmem>>, vector<1x128xf32>,
    } else {
    }
    return
  }
  func.func @transform_0(%arg0: i32, %arg1: i32) -> (i32, i32) {
    %c0_i32 = arith.constant 0 : i32
    %c0_i32_0 = arith.constant 0 : i32
    %c0_i32_1 = arith.constant 0 : i32
    return %c0_i32, %c0_i32_0 : i32, i32
  }
  func.func @transform_1(%arg0: i32, %arg1: i32) -> (i32, i32) {
    %c1_i32 = arith.constant 1 : i32
    %0 = arith.muli %arg0, %c1_i32 : i32
    %1 = arith.addi %0, %arg1 : i32
    %c0_i32 = arith.constant 0 : i32
    %2 = arith.minsi %1, %c0_i32 : i32
    %c0_i32_0 = arith.constant 0 : i32
    %c0_i32_1 = arith.constant 0 : i32
    return %c0_i32_0, %2 : i32, i32
  }
  func.func @transform_2(%arg0: i32, %arg1: i32) -> (i32, i32) {
    %c0_i32 = arith.constant 0 : i32
    %c0_i32_0 = arith.constant 0 : i32
    return %c0_i32, %arg0 : i32, i32
  }
}

</mosaic_0001>

<llo_original>
// kernel: tpu_custom_call.1
$region0: #{tpu_custom_call.1}
  #allocation0 [shape = 'u32[]', space=smem, size = 0x4, offset = 0x4, fixed_abs, tag = 'smem constant byte address 0x4 - core index']
  #allocation1 [shape = 'u32[72,128]{1,0:T(1,128)}', space=vmem, size = 0x9000, scoped, tag = 'internal scratch']
  #allocation2 [shape = 'f32[8,16]{1,0:T(8,128)}', space=vmem, size = 0x1000, scoped, tag = 'scratch operand']
  %s0 = inlined_call_operand.hbm [shape: f32[8,16], index: 0, kind: input, shape index: {}]
  %s1 = inlined_call_operand.hbm [shape: f32[16,128], index: 1, kind: input, shape index: {}]
  %s2 = inlined_call_operand.hbm [shape: f32[1,256], index: 2, kind: output, shape index: {}]
  %s3 = sld [smem:[#allocation0]]
  $region57: #{tpu_custom_call.1} parent=0
    _
  %s5 = ssub.s32 1, %s3
  %s6 = scalar_select 0, %s5, %s3
  $region1: #{tpu_custom_call.1} parent=0
    #allocation3 [shape = 'u8[4096]{0}', space=vmem, size = 0x1000, scoped, tag = 'input window, operand 0, single buffered']
    #allocation4 [shape = 's32[2]{0}', space=sflag, size = 0x8, scoped, tag = 'scoped memory for tpu_custom_call.1']
    #allocation5 [shape = 's32[2]{0}', space=sflag, size = 0x8, scoped, tag = 'scoped memory for tpu_custom_call.1']
    #allocation6 [shape = 'u8[16384]{0}', space=vmem, size = 0x4000, scoped, tag = 'input window, operand 1']
    #allocation7 [shape = 's32[2]{0}', space=sflag, size = 0x8, scoped, tag = 'scoped memory for tpu_custom_call.1']
    #allocation8 [shape = 'u8[1024]{0}', space=vmem, size = 0x400, scoped, tag = 'output window, operand 0']
    %7 = vsyncpa [#allocation4], 0
    %8 = vsyncpa [#allocation7], 0
    %s9 = scalar_lea.sflag [#allocation7], 1
    %10 = vsyncpa %s9, 0
    %11 = vsyncpa [#allocation5], 0
    %s12 = scalar_lea.sflag [#allocation5], 1
    %13 = vsyncpa %s12, 0
    loop: start=0, step=1, limit=4
    $region2: #{tpu_custom_call.1} parent=1 // loop_pre_header
      _
    $region3: #{tpu_custom_call.1} parent=1 // loop_header
      %s15 = sphi 0, %s19
      %p16 = scmp.ge.s32.totalorder %s15, 4
      %s22 = sphi 0, %s34
      %s23 = sphi 0, %s30
      %s24 = sphi 0, %s22
      %s25 = sphi 0, %s23
      %s26 = sphi 0, %s24
      %s27 = sphi 0, %s25
      %s35 = sphi 0, %s35
      %s37 = sphi 0, %s35
      %s38 = sphi 0, %s37
      %s52 = sphi 0, %s38
      %s64 = sphi 0, %s66
      %s67 = sphi 0, %s64
      %s68 = sphi 0, %s67
      %s84 = sphi 0, %s68
      %s90 = sphi 0, %s92
      %s93 = sphi 0, %s90
      %s94 = sphi 0, %s93
      %s110 = sphi 0, %s94
    $region4: #{tpu_custom_call.1} parent=1 // loop_header_branch
      %18 = sbr.rel (%p16) target = $region8
    $region5: #{tpu_custom_call.1} parent=1 // loop_body
      %s20 = ssub.s32 %s15, 1
      %s21 = ssub.s32 %s15, 2
      %s28 = sadd.s32 1, %s23
      %p29 = scmp.ge.s32.totalorder %s28, 1
      %s30 = scalar_select %p29, 0, %s28
      %s31 = sadd.s32 1, %s22
      %s32 = scalar_select %p29, %s31, %s22
      %p33 = scmp.ge.s32.totalorder %s32, 2
      %s34 = scalar_select %p33, 0, %s32
      %s36 = sadd.s32 %s35, 1
      %p39 = scmp.eq.s32.totalorder %s15, 1
      %p40 = scmp.ne.s32.totalorder %s35, %s37
      %p41 = scmp.eq.s32.totalorder %s15, 0
      %p42 = por %p40, %p41
      %p43 = scmp.ne.s32.totalorder %s35, %s37
      %p44 = scmp.eq.s32.totalorder %s20, 1
      %p45 = por %p43, %p44
      %p46 = scmp.ne.s32.totalorder %s37, %s38
      %p47 = scmp.eq.s32.totalorder %s20, 0
      %p48 = por %p46, %p47
      %p49 = scmp.ne.s32.totalorder %s37, %s38
      %p50 = scmp.eq.s32.totalorder %s21, 1
      %p51 = por %p49, %p50
      %p53 = scmp.ne.s32.totalorder %s38, %s52
      %p54 = scmp.eq.s32.totalorder %s21, 0
      %p55 = por %p53, %p54
      %s56 = sadd.s32 %s22, %s23
      %p57 = scmp.lt.s32.totalorder %s56, 0
      %s58 = scalar_select %p57, %s56, 0
      %s59 = sadd.s32 %s34, %s30
      %p60 = scmp.lt.s32.totalorder %s59, 0
      %s61 = scalar_select %p60, %s59, 0
      %s62 = ssub.s32 %s58, %s61
      %p63 = scmp.eq.s32.totalorder %s62, 0
      %s65 = sadd.s32 %s64, 1
      %s66 = scalar_select %p63, %s64, %s65
      %p69 = pneg %p63
      %p70 = scmp.eq.s32.totalorder %s15, 1
      %p71 = por %p69, %p70
      %p72 = scmp.ne.s32.totalorder %s64, %s67
      %p73 = scmp.eq.s32.totalorder %s15, 0
      %p74 = por %p72, %p73
      %p75 = scmp.ne.s32.totalorder %s64, %s67
      %p76 = scmp.eq.s32.totalorder %s20, 1
      %p77 = por %p75, %p76
      %p78 = scmp.ne.s32.totalorder %s67, %s68
      %p79 = scmp.eq.s32.totalorder %s20, 0
      %p80 = por %p78, %p79
      %p81 = scmp.ne.s32.totalorder %s67, %s68
      %p82 = scmp.eq.s32.totalorder %s21, 1
      %p83 = por %p81, %p82
      %p85 = scmp.ne.s32.totalorder %s68, %s84
      %p86 = scmp.eq.s32.totalorder %s21, 0
      %p87 = por %p85, %p86
      %s88 = ssub.s32 %s22, %s34
      %p89 = scmp.eq.s32.totalorder %s88, 0
      %s91 = sadd.s32 %s90, 1
      %s92 = scalar_select %p89, %s90, %s91
      %p95 = pneg %p89
      %p96 = scmp.eq.s32.totalorder %s15, 1
      %p97 = por %p95, %p96
      %p98 = scmp.ne.s32.totalorder %s90, %s93
      %p99 = scmp.eq.s32.totalorder %s15, 0
      %p100 = por %p98, %p99
      %p101 = scmp.ne.s32.totalorder %s90, %s93
      %p102 = scmp.eq.s32.totalorder %s20, 1
      %p103 = por %p101, %p102
      %p104 = scmp.ne.s32.totalorder %s93, %s94
      %p105 = scmp.eq.s32.totalorder %s20, 0
      %p106 = por %p104, %p105
      %p107 = scmp.ne.s32.totalorder %s93, %s94
      %p108 = scmp.eq.s32.totalorder %s21, 1
      %p109 = por %p107, %p108
      %p111 = scmp.ne.s32.totalorder %s94, %s110
      %p112 = scmp.eq.s32.totalorder %s21, 0
      %p113 = por %p111, %p112
      %p114 = scmp.le.s32.totalorder 1, %s15
      %p115 = scmp.lt.s32.totalorder %s15, 3
      %p116 = pnand %p114, %p115
      %p117 = pneg %p116
      // Predicated region
      $region9: #{tpu_custom_call.1} parent=5 // pred_check
        _
      $region10: #{tpu_custom_call.1} parent=5 // pred_check_branch
        %119 = sbr.rel (%p116) target = $region12
      $region11: #{tpu_custom_call.1} parent=5 // pred_region
        %s120 = ssub.s32 %s15, 1
        // Predicated region
        $region13: #{tpu_custom_call.1} parent=11 // pred_check
          %p121 = pneg %p48
        $region14: #{tpu_custom_call.1} parent=11 // pred_check_branch
          %123 = sbr.rel (%p121) target = $region16
        $region15: #{tpu_custom_call.1} parent=11 // pred_region
          %125 = vsyncadd [#allocation4], 0
          %s127 = sshll.u32 %s0, 4
          %s128 = int_to_ptr.hbm [resolvable:$true] %s127
          %s129 = sshll.u32 [#allocation3], 4
          %s130 = int_to_ptr.vmem [resolvable:$true] %s129
          %132 = dma.hbm_to_vmem [thread:$0]  %s128, 128, %s130, [#allocation4]
        $region16: #{tpu_custom_call.1} parent=11 // pred_fallthru
          _
      $region12: #{tpu_custom_call.1} parent=5 // pred_fallthru
        _
      %p133 = scmp.lt.s32.totalorder %s15, 2
      // Predicated region
      $region17: #{tpu_custom_call.1} parent=5 // pred_check
        %p134 = pneg %p133
      $region18: #{tpu_custom_call.1} parent=5 // pred_check_branch
        %136 = sbr.rel (%p134) target = $region20
      $region19: #{tpu_custom_call.1} parent=5 // pred_region
        // Predicated region
        $region21: #{tpu_custom_call.1} parent=19 // pred_check
          %p137 = pneg %p74
        $region22: #{tpu_custom_call.1} parent=19 // pred_check_branch
          %139 = sbr.rel (%p137) target = $region24
        $region23: #{tpu_custom_call.1} parent=19 // pred_region
          %s140 = sand.u32 %s64, 1
          %s141 = scalar_lea.sflag [#allocation7], %s140
          %s142 = sand.u32 %s64, 1
          %s143 = smul.addr %s142, 16
          %s144 = scalar_lea.vmem [#allocation6], %s143
          %s145 = sadd.s32 %s22, %s23
          %p146 = scmp.lt.s32.totalorder %s145, 0
          %s147 = scalar_select %p146, %s145, 0
          %149 = vsyncadd %s141, 0
          %s150 = smul.addr %s147, 8
          %s151 = scalar_lea.hbm %s1, %s150
          %s152 = sshll.u32 %s151, 4
          %s153 = int_to_ptr.hbm [resolvable:$true] %s152
          %s154 = sshll.u32 %s144, 4
          %s155 = int_to_ptr.vmem [resolvable:$true] %s154
          %160 = dma.hbm_to_vmem [thread:$0]  %s153, 256, %s155, %s141, 128, 128, 8
        $region24: #{tpu_custom_call.1} parent=19 // pred_fallthru
          _
      $region20: #{tpu_custom_call.1} parent=5 // pred_fallthru
        _
      %p161 = scmp.le.s32.totalorder 1, %s15
      %p162 = scmp.lt.s32.totalorder %s15, 3
      %p163 = pnand %p161, %p162
      %p164 = pneg %p163
      // Predicated region
      $region25: #{tpu_custom_call.1} parent=5 // pred_check
        _
      $region26: #{tpu_custom_call.1} parent=5 // pred_check_branch
        %166 = sbr.rel (%p163) target = $region28
      $region27: #{tpu_custom_call.1} parent=5 // pred_region
        %s167 = ssub.s32 %s15, 1
        // Predicated region
        $region29: #{tpu_custom_call.1} parent=27 // pred_check
          %p168 = pneg %p48
        $region30: #{tpu_custom_call.1} parent=27 // pred_check_branch
          %170 = sbr.rel (%p168) target = $region32
        $region31: #{tpu_custom_call.1} parent=27 // pred_region
          %172 = dma.done [#allocation4], 128
        $region32: #{tpu_custom_call.1} parent=27 // pred_fallthru
          _
        %s173 = sand.u32 %s67, 1
        %s174 = scalar_lea.sflag [#allocation7], %s173
        %s175 = sand.u32 %s67, 1
        %s176 = smul.addr %s175, 16
        %s177 = scalar_lea.vmem [#allocation6], %s176
        // Predicated region
        $region33: #{tpu_custom_call.1} parent=27 // pred_check
          %p178 = pneg %p80
        $region34: #{tpu_custom_call.1} parent=27 // pred_check_branch
          %180 = sbr.rel (%p178) target = $region36
        $region35: #{tpu_custom_call.1} parent=27 // pred_region
          %182 = dma.done %s174, 256
        $region36: #{tpu_custom_call.1} parent=27 // pred_fallthru
          _
        %p183 = pneg %p48
        %p184 = pneg %p45
        %s185 = sand.u32 %s67, 1
        %s186 = scalar_lea.sflag [#allocation7], %s185
        %s187 = sand.u32 %s67, 1
        %s188 = smul.addr %s187, 16
        %s189 = scalar_lea.vmem [#allocation6], %s188
        %p190 = pneg %p80
        %p191 = pneg %p77
        %p192 = pneg %p106
        %p193 = pneg %p103
        %s194 = sand.u32 %s93, 1
        %s195 = scalar_lea.sflag [#allocation5], %s194
        %s196 = sand.u32 %s93, 1
        %s197 = scalar_lea.vmem [#allocation8], %s196
        %s198 = sadd.s32 %s24, %s25
        %p199 = scmp.lt.s32.totalorder %s198, 0
        %s200 = scalar_select %p199, %s198, 0
        %p201 = scmp.eq.s32.totalorder %s25, 0
        // Predicated region
        $region37: #{tpu_custom_call.1} parent=27 // pred_check
          %p202 = pneg %p201
        $region38: #{tpu_custom_call.1} parent=27 // pred_check_branch
          %204 = sbr.rel (%p202) target = $region40
        $region39: #{tpu_custom_call.1} parent=27 // pred_region
          %v205 = vld [vmem:[#allocation3] sm:$0xff]
          %vm206 = vcmask 130048
          %v207 = vsel %vm206, %v205, -inf
          %v208 = vrot.slane %v207, 4
          %v209 = vmax.f32 %v207, %v208
          %v210 = vrot.slane %v209, 2
          %v211 = vmax.f32 %v209, %v210
          %v212 = vrot.slane %v211, 1
          %v213 = vmax.f32 %v211, %v212
          %v214 = vsub.f32 %v205, %v213
          %v215 = vmul.f32 %v214, 1.442695
          %v216 = vpow.pop %v215
          %v217 = vsel %vm206, %v216, 0.0
          %v218 = vrot.slane %v217, 4
          %v219 = vadd.f32 %v217, %v218
          %v220 = vrot.slane %v219, 2
          %v221 = vadd.f32 %v219, %v220
          %v222 = vrot.slane %v221, 1
          %v223 = vadd.f32 %v221, %v222
          %v224 = vrcp.pop %v223
          %v225 = vmul.f32 %v223, %v224
          %v226 = vsub.f32 1.0, %v225
          %v227 = vmul.f32 %v224, %v226
          %v228 = vadd.f32 %v224, %v227
          %vm229 = vweird.f32 %v223
          %vm230 = vweird.f32 %v224
          %vm231 = vmor %vm229, %vm230
          %v232 = vsel %vm231, %v224, %v228
          %v233 = vand.u32 2147483647, %v223
          %vm234 = vcmp.eq.f32.partialorder %v233, 8.507059e+37
          %v235 = vand.u32 %v223, 2147483648
          %v236 = vor.u32 1.1754944e-38, %v235
          %v237 = vsel %vm234, %v236, %v232
          %v238 = vmul.f32 %v216, %v237
          %239 = vst.msk [vmem:[#allocation2] sm:$0xff] %vm206, %v238
          %240 = vst [vmem:[%s197] sm:$0x1] 0.0
        $region40: #{tpu_custom_call.1} parent=27 // pred_fallthru
          _
        %v241 = vld [vmem:[%s177] sm:$0xff]
        %v242 = vld [vmem:[%s177 + $0x8] sm:$0xff]
        %v243 = vld [vmem:[#allocation2] sm:$0xff]
        %vm244 = vcmask 130048
        %v246 = vsel %vm244, %v243, 0
        %248 = vmatpush.msra.mxu0 0.0
        %249 = vmatpush.msra.mxu0 0.0
        %250 = vmatpush.msra.mxu0 0.0
        %251 = vmatpush.msra.mxu0 0.0
        %252 = vmatpush.msra.mxu0 0.0
        %253 = vmatpush.msra.mxu0 0.0
        %254 = vmatpush.msra.mxu0 0.0
        %255 = vmatpush.msra.mxu0 0.0
        %256 = vmatpush.msra.mxu0 0.0
        %257 = vmatpush.msra.mxu0 0.0
        %258 = vmatpush.msra.mxu0 0.0
        %259 = vmatpush.msra.mxu0 0.0
        %260 = vmatpush.msra.mxu0 0.0
        %261 = vmatpush.msra.mxu0 0.0
        %262 = vmatpush.msra.mxu0 %v242
        %263 = vmatpush.msra.mxu0 %v241
        %264 = vmatmul.f32.gmra.mxu0 %v246
        %v265 = vpop.f32.mrf.mxu0
        %v266 = vadd.f32 0.0, %v265
        %267 = vdwg.mxu0
        %v268 = vrot.slane %v266, 4
        %v269 = vadd.f32 %v266, %v268
        %v270 = vrot.slane %v269, 2
        %v271 = vadd.f32 %v269, %v270
        %v272 = vrot.slane %v271, 1
        %v273 = vadd.f32 %v271, %v272
        %v274 = vmul.f32 %v266, %v266
        %v275 = vrot.slane %v274, 4
        %v276 = vadd.f32 %v274, %v275
        %v277 = vrot.slane %v276, 2
        %v278 = vadd.f32 %v276, %v277
        %v279 = vrot.slane %v278, 1
        %v280 = vadd.f32 %v278, %v279
        %v281 = vmul.f32 %v273, %v273
        %v282 = vsub.f32 %v281, %v280
        %s283 = sadd.s32 %s24, %s25
        %s284 = smul.u32 %s283, 128
        %s285 = ssub.s32 128, %s284
        %v286 = vlaneseq
        %v287 = vand.u32 %v286, 127
        %v288 = vstv %s285
        %vm289 = vcmp.lt.s32.totalorder %v287, %v288
        %v290 = vsel %vm289, %v282, 0.0
        %v291 = vld [vmem:[%s197] sm:$0x1]
        %292 = vadd.xlane.f32.xlu0 %v290
        %v293 = vpop.xlane.xlu0 %292
        %v294 = vmul.f32 %v293, 0.5
        %v295 = vadd.f32 %v291, %v294
        %296 = vst [vmem:[%s197] sm:$0x1] %v295
        // Predicated region
        $region41: #{tpu_custom_call.1} parent=27 // pred_check
          %p297 = pneg %p201
        $region42: #{tpu_custom_call.1} parent=27 // pred_check_branch
          %299 = sbr.rel (%p297) target = $region44
        $region43: #{tpu_custom_call.1} parent=27 // pred_region
          %v300 = vld [vmem:[%s197] sm:$0x1]
          %v301 = vmul.f32 %v300, 0.035714287
          %302 = vst [vmem:[%s197] sm:$0x1] %v301
        $region44: #{tpu_custom_call.1} parent=27 // pred_fallthru
          _
        %s303 = sand.u32 %s93, 1
        %s304 = scalar_lea.sflag [#allocation5], %s303
        %s305 = sand.u32 %s93, 1
        %s306 = scalar_lea.vmem [#allocation8], %s305
        // Predicated region
        $region45: #{tpu_custom_call.1} parent=27 // pred_check
          %p307 = pneg %p103
        $region46: #{tpu_custom_call.1} parent=27 // pred_check_branch
          %309 = sbr.rel (%p307) target = $region48
        $region47: #{tpu_custom_call.1} parent=27 // pred_region
          %311 = vsyncadd %s304, 0
          %s312 = scalar_lea.hbm %s2, %s24
          %s314 = sshll.u32 %s306, 4
          %s315 = int_to_ptr.vmem [resolvable:$true] %s314
          %s316 = sshll.u32 %s312, 4
          %s317 = int_to_ptr.hbm [resolvable:$true] %s316
          %319 = dma.vmem_to_hbm [thread:$0]  %s315, 16, %s317, %s304
        $region48: #{tpu_custom_call.1} parent=27 // pred_fallthru
          _
      $region28: #{tpu_custom_call.1} parent=5 // pred_fallthru
        _
      %p320 = scmp.le.s32.totalorder 2, %s15
      // Predicated region
      $region49: #{tpu_custom_call.1} parent=5 // pred_check
        %p321 = pneg %p320
      $region50: #{tpu_custom_call.1} parent=5 // pred_check_branch
        %323 = sbr.rel (%p321) target = $region52
      $region51: #{tpu_custom_call.1} parent=5 // pred_region
        %s324 = ssub.s32 %s15, 2
        // Predicated region
        $region53: #{tpu_custom_call.1} parent=51 // pred_check
          %p325 = pneg %p109
        $region54: #{tpu_custom_call.1} parent=51 // pred_check_branch
          %327 = sbr.rel (%p325) target = $region56
        $region55: #{tpu_custom_call.1} parent=51 // pred_region
          %s328 = sand.u32 %s94, 1
          %s329 = scalar_lea.sflag [#allocation5], %s328
          %s330 = sand.u32 %s94, 1
          %s331 = scalar_lea.vmem [#allocation8], %s330
          %333 = dma.done %s329, 16
        $region56: #{tpu_custom_call.1} parent=51 // pred_fallthru
          _
      $region52: #{tpu_custom_call.1} parent=5 // pred_fallthru
        _
    $region6: #{tpu_custom_call.1} parent=1 // loop_footer
      %s19 = sadd.s32 1, %s15
    $region7: #{tpu_custom_call.1} parent=1 // loop_footer_branch
      %14 = sbr.rel target = $region3
    $region8: #{tpu_custom_call.1} parent=1 // loop_exit
      _
    %334 = vsyncpa [#allocation4], 1
    %s335 = scalar_lea.sflag [#allocation4], 1
    %336 = vsyncpa %s335, 1
    %337 = vsyncpa [#allocation7], 1
    %s338 = scalar_lea.sflag [#allocation7], 1
    %339 = vsyncpa %s338, 1
    %340 = vsyncpa [#allocation5], 1
    %s341 = scalar_lea.sflag [#allocation5], 1
    %342 = vsyncpa %s341, 1

</llo_original>
